<compile_context>
chip_gen: v7x
topology: tpu7x:2x2x1
jax: 0.10.0
libtpu: 0.0.40
codegen_flags: <defaults>
</compile_context>

<pallas_src>
import functools

import jax
import jax.numpy as jnp
from jax import lax
from jax.experimental import pallas as pl
from jax.experimental.pallas import tpu as pltpu


def _round_up(a, m):
    return ((a + m - 1) // m) * m


def fm_kernel(x_ref, vw_ref, v2s_ref, b_ref, out_ref, *, k):
    # x_ref  : (TB, n)    streamed, native dtype (f32 or bf16)
    # vw_ref : (n, k+1)   [V | w], same dtype as x, resident (single-buffered)
    # v2s_ref: (n, 1)     sum(V*V, axis=1) in f32, resident (single-buffered)
    # b_ref  : (1, 1)     f32 bias in SMEM
    # out_ref: (TB, 1)    f32
    x = x_ref[...]
    vw = vw_ref[...]
    v2s = v2s_ref[...]
    b = b_ref[0, 0]

    # One fused MXU pass: columns [:k] are x @ V, column k is x @ w.
    xvw = jnp.dot(x, vw, preferred_element_type=jnp.float32)        # (TB, k+1)

    # Fold linear term + 0.5*sum((xV)^2) into a single lane reduce: columns
    # < k contribute 0.5*(xV)^2, column k passes through unsquared (= x @ w).
    col = lax.broadcasted_iota(jnp.int32, xvw.shape, 1)
    fused = jnp.sum(jnp.where(col < k, 0.5 * xvw * xvw, xvw),
                    axis=1, keepdims=True)                          # (TB, 1)

    # x^2 @ sum_j V^2[:, j]  ==  sum(x^2 @ V^2, axis=1)  (exact rewrite).
    # Kept in f32: the interaction term is cancellation-sensitive and this
    # N=1 matvec is hidden under the HBM stream of x on all generations.
    xf = x.astype(jnp.float32)
    x2v2 = jnp.dot(xf * xf, v2s, preferred_element_type=jnp.float32)  # (TB, 1)

    out_ref[...] = (fused - 0.5 * x2v2 + b).astype(out_ref.dtype)


def fm_forward(x, linear_weight, linear_bias, V, *, block_b=None):
    """Factorization-machine forward pass.

    x             : (B, n)   streamed in its native dtype (f32 or bf16)
    linear_weight : (1, n)   (torch nn.Linear(n, 1).weight layout)
    linear_bias   : (1,)
    V             : (n, k)
    returns       : (B, 1) float32
    """
    B, n = x.shape
    k = V.shape[1]
    x_dtype = x.dtype
    x_bytes = jnp.dtype(x_dtype).itemsize

    # Weight-side precompute: tiny, done once, never touches the x stream.
    vw = jnp.concatenate([V, linear_weight.reshape(n, 1)], axis=1).astype(x_dtype)
    v2sum = jnp.sum(V.astype(jnp.float32) ** 2, axis=1, keepdims=True)   # (n, 1)
    b = jnp.asarray(linear_bias, jnp.float32).reshape(1, 1)

    # Batch tile: sized so the double-buffered x tile stays within ~24 MiB,
    # capped at 2048 rows (mem-bound roofline saturates by ~1024-row tiles).
    if block_b is None:
        budget = 24 << 20
        block_b = max(8, budget // (2 * n * x_bytes))
        block_b = min(block_b, 2048)
    tb = _round_up(min(block_b, _round_up(B, 8)), 8)

    # Ragged last block handled by Pallas (masked writeback) — no jnp.pad pass.
    grid = (pl.cdiv(B, tb),)

    # Explicit scoped-VMEM limit: 2x x-tile (double buffered) + resident
    # weights + output, with headroom; capped at 48 MiB to fit v7x's 64 MiB.
    need = (2 * tb * n * x_bytes
            + vw.size * jnp.dtype(vw.dtype).itemsize
            + v2sum.size * 4
            + 2 * tb * 4)
    vmem_limit = min(48 << 20, max(32 << 20, int(1.5 * need)))

    out = pl.pallas_call(
        functools.partial(fm_kernel, k=k),
        out_shape=jax.ShapeDtypeStruct((B, 1), jnp.float32),
        grid=grid,
        in_specs=[
            pl.BlockSpec((tb, n), lambda i: (i, 0)),               # streamed x
            pl.BlockSpec((n, k + 1), lambda i: (0, 0),
                         pipeline_mode=pl.Buffered(1)),            # resident [V | w]
            pl.BlockSpec((n, 1), lambda i: (0, 0),
                         pipeline_mode=pl.Buffered(1)),            # resident sum(V^2)
            pl.BlockSpec(memory_space=pltpu.MemorySpace.SMEM),     # scalar bias
        ],
        out_specs=pl.BlockSpec((tb, 1), lambda i: (i, 0)),
        compiler_params=pltpu.CompilerParams(
            # Independent batch tiles: pipelined on 1-TC chips, shardable
            # across both TensorCores on v7x.
            dimension_semantics=("parallel",),
            vmem_limit_bytes=vmem_limit,
        ),
    )(x, vw, v2sum, b)

    return out


if __name__ == "__main__":
    # Small shapes consistent with FMLayer(n, k); B non-divisible by the tile
    # exercises the cdiv grid + masked partial last block (block_b=128 -> 2 steps).
    B, n, k = 200, 32, 16

    key = jax.random.PRNGKey(0)
    kx, kw, kb, kv = jax.random.split(key, 4)

    x = jax.random.normal(kx, (B, n), dtype=jnp.float32)
    w_linear = jax.random.normal(kw, (1, n), dtype=jnp.float32) * 0.1   # nn.Linear(n,1).weight
    b_linear = jax.random.normal(kb, (1,), dtype=jnp.float32) * 0.1     # nn.Linear(n,1).bias
    V = jax.random.normal(kv, (n, k), dtype=jnp.float32)

    # ---- float32 path (exact semantics) vs pure-JAX reference -------------
    out = fm_forward(x, w_linear, b_linear, V, block_b=128)
    out = jax.block_until_ready(out)

    linear_ref = x @ w_linear.T + b_linear
    inter_ref = 0.5 * jnp.sum((x @ V) ** 2 - (x ** 2) @ (V ** 2),
                              axis=1, keepdims=True)
    ref = linear_ref + inter_ref
    assert out.shape == (B, 1)
    assert jnp.allclose(out, ref, atol=1e-3, rtol=1e-3)

    # ---- auto-sized tile path (single block covering B) -------------------
    out_auto = jax.block_until_ready(fm_forward(x, w_linear, b_linear, V))
    assert jnp.allclose(out_auto, ref, atol=1e-3, rtol=1e-3)

    # ---- bf16-upstream path: x already stored as bf16 (no wrapper cast) ---
    x_bf = x.astype(jnp.bfloat16)
    out_bf = jax.block_until_ready(
        fm_forward(x_bf, w_linear, b_linear, V, block_b=128))

    x_q = x_bf.astype(jnp.float32)
    vw_q = jnp.concatenate([V, w_linear.T], axis=1).astype(jnp.bfloat16).astype(jnp.float32)
    xvw_q = x_q @ vw_q
    ref_bf = (xvw_q[:, k:] + b_linear
              + 0.5 * jnp.sum(xvw_q[:, :k] ** 2, axis=1, keepdims=True)
              - 0.5 * (x_q ** 2) @ jnp.sum(V ** 2, axis=1, keepdims=True))
    assert out_bf.shape == (B, 1)
    assert jnp.allclose(out_bf, ref_bf, atol=1e-2, rtol=1e-2)

    print("KERNEL_OK")
</pallas_src>

<mosaic_0001>
module attributes {stable_mosaic.version = 11 : i64} {
  func.func @fm_kernel(%arg0: i32, %arg1: memref<128x32xf32, #tpu.memory_space<vmem>>, %arg2: memref<32x17xf32, #tpu.memory_space<vmem>>, %arg3: memref<32x1xf32, #tpu.memory_space<vmem>>, %arg4: memref<1x1xf32, #tpu.memory_space<smem>>, %arg5: memref<128x1xf32, #tpu.memory_space<vmem>>) attributes {dimension_semantics = [#tpu.dimension_semantics<parallel>], iteration_bounds = array<i64: 2>, scalar_prefetch = 0 : i64, scratch_operands = 0 : i64, tpu.core_type = #tpu.core_type<tc>, window_params = [{transform_indices = @transform_0, window_bounds = array<i64: 128, 32>}, {pipeline_mode = #tpu.pipeline_mode<synchronous>, transform_indices = @transform_1, window_bounds = array<i64: 32, 17>}, {pipeline_mode = #tpu.pipeline_mode<synchronous>, transform_indices = @transform_2, window_bounds = array<i64: 32, 1>}, {transform_indices = @transform_3, window_bounds = array<i64: 1, 1>}, {transform_indices = @transform_4, window_bounds = array<i64: 128, 1>}]} {
    %c0 = arith.constant 0 : index
    %c0_0 = arith.constant 0 : index
    %0 = vector.load %arg1[%c0, %c0_0] : memref<128x32xf32, #tpu.memory_space<vmem>>, vector<128x32xf32>
    %c0_1 = arith.constant 0 : index
    %c0_2 = arith.constant 0 : index
    %1 = vector.load %arg2[%c0_1, %c0_2] : memref<32x17xf32, #tpu.memory_space<vmem>>, vector<32x17xf32>
    %c0_3 = arith.constant 0 : index
    %c0_4 = arith.constant 0 : index
    %2 = vector.load %arg3[%c0_3, %c0_4] : memref<32x1xf32, #tpu.memory_space<vmem>>, vector<32x1xf32>
    %c0_5 = arith.constant 0 : index
    %c0_6 = arith.constant 0 : index
    %3 = memref.load %arg4[%c0_5, %c0_6] : memref<1x1xf32, #tpu.memory_space<smem>>
    %cst = arith.constant dense<0.000000e+00> : vector<128x17xf32>
    %4 = tpu.matmul %0, %1, %cst {dimension_numbers = #tpu.dot_dimension_numbers<[1], [0], [0], [1], [0, 0, 1, 1], [], []>} : vector<128x32xf32>, vector<32x17xf32>, vector<128x17xf32> -> vector<128x17xf32>
    %5 = tpu.iota {dimensions = array<i32: 1>} : vector<128x17xi32>
    %c16_i32 = arith.constant 16 : i32
    %6 = vector.broadcast %c16_i32 : i32 to vector<128x17xi32>
    %7 = arith.cmpi slt, %5, %6 : vector<128x17xi32>
    %cst_7 = arith.constant 5.000000e-01 : f32
    %8 = vector.broadcast %cst_7 : f32 to vector<128x17xf32>
    %9 = arith.mulf %8, %4 : vector<128x17xf32>
    %10 = arith.mulf %9, %4 : vector<128x17xf32>
    %11 = arith.select %7, %10, %4 : vector<128x17xi1>, vector<128x17xf32>
    %cst_8 = arith.constant dense<0.000000e+00> : vector<128xf32>
    %12 = vector.multi_reduction <add>, %11, %cst_8 [1] : vector<128x17xf32> to vector<128xf32>
    %13 = vector.shape_cast %12 : vector<128xf32> to vector<128x1xf32>
    %14 = arith.mulf %0, %0 : vector<128x32xf32>
    %cst_9 = arith.constant dense<0.000000e+00> : vector<128x1xf32>
    %15 = tpu.matmul %14, %2, %cst_9 {dimension_numbers = #tpu.dot_dimension_numbers<[1], [0], [0], [1], [0, 0, 1, 1], [], []>} : vector<128x32xf32>, vector<32x1xf32>, vector<128x1xf32> -> vector<128x1xf32>
    %cst_10 = arith.constant 5.000000e-01 : f32
    %16 = vector.broadcast %cst_10 : f32 to vector<128x1xf32>
    %17 = arith.mulf %16, %15 : vector<128x1xf32>
    %18 = arith.subf %13, %17 : vector<128x1xf32>
    %19 = vector.broadcast %3 : f32 to vector<128x1xf32>
    %20 = arith.addf %18, %19 : vector<128x1xf32>
    %c0_11 = arith.constant 0 : index
    %c0_12 = arith.constant 0 : index
    %21 = vector.load %arg5[%c0_11, %c0_12] : memref<128x1xf32, #tpu.memory_space<vmem>>, vector<128x1xf32>
    tpu.vector_store %arg5[%c0_11, %c0_12], %20 {strides = array<i32>} : memref<128x1xf32, #tpu.memory_space<vmem>>, vector<128x1xf32>,
    return
  }
  func.func @transform_0(%arg0: i32) -> (i32, i32) {
    %c0_i32 = arith.constant 0 : i32
    %c0_i32_0 = arith.constant 0 : i32
    return %arg0, %c0_i32 : i32, i32
  }
  func.func @transform_1(%arg0: i32) -> (i32, i32) {
    %c0_i32 = arith.constant 0 : i32
    %c0_i32_0 = arith.constant 0 : i32
    %c0_i32_1 = arith.constant 0 : i32
    return %c0_i32, %c0_i32_0 : i32, i32
  }
  func.func @transform_2(%arg0: i32) -> (i32, i32) {
    %c0_i32 = arith.constant 0 : i32
    %c0_i32_0 = arith.constant 0 : i32
    %c0_i32_1 = arith.constant 0 : i32
    return %c0_i32, %c0_i32_0 : i32, i32
  }
  func.func @transform_3(%arg0: i32) -> (i32, i32) {
    %c0_i32 = arith.constant 0 : i32
    %c0_i32_0 = arith.constant 0 : i32
    %c0_i32_1 = arith.constant 0 : i32
    return %c0_i32, %c0_i32_0 : i32, i32
  }
  func.func @transform_4(%arg0: i32) -> (i32, i32) {
    %c0_i32 = arith.constant 0 : i32
    %c0_i32_0 = arith.constant 0 : i32
    return %arg0, %c0_i32 : i32, i32
  }
}

</mosaic_0001>

<llo_original>
// kernel: tpu_custom_call.1
$region0: #{tpu_custom_call.1}
  #allocation0 [shape = 'u32[]', space=smem, size = 0x4, offset = 0x4, fixed_abs, tag = 'smem constant byte address 0x4 - core index']
  #allocation1 [shape = 'u32[144,128]{1,0:T(1,128)}', space=vmem, size = 0x12000, scoped, tag = 'internal scratch']
  #allocation2 [shape = 'f32[1,1]{1,0:T(1,128)S(6)}', space=smem, size = 0x200, scoped, tag = 'scoped memory for tpu_custom_call.1']
  %s0 = inlined_call_operand.vmem [shape: f32[200,32], index: 0, kind: input, shape index: {}]
  %s1 = inlined_call_operand.vmem [shape: f32[32,17], index: 1, kind: input, shape index: {}]
  %s2 = inlined_call_operand.vmem [shape: f32[32,1], index: 2, kind: input, shape index: {}]
  %s3 = inlined_call_operand.<no memory space> [shape: f32[1,1], index: 3, kind: input, shape index: {}]
  %s4 = inlined_call_operand.vmem [shape: f32[200,1], index: 4, kind: output, shape index: {}]
  %s5 = sld [smem:[#allocation0]]
  $region97: #{tpu_custom_call.1} parent=0
    _
  %s7 = ssub.s32 1, %s5
  %s8 = scalar_select 0, %s7, %s5
  %9 = sst [smem:[#allocation2]] %s3
  $region1: #{tpu_custom_call.1} parent=0
    #allocation3 [shape = 'u8[131072]{0}', space=vmem, size = 0x20000, scoped, tag = 'output window, operand 0']
    loop: start=0, step=1, limit=4
    $region2: #{tpu_custom_call.1} parent=1 // loop_pre_header
      _
    $region3: #{tpu_custom_call.1} parent=1 // loop_header
      %s11 = sphi 0, %s15
      %p12 = scmp.ge.s32.totalorder %s11, 4
      %s21 = sphi 0, %s23
      %s24 = sphi 0, %s21
      %s25 = sphi 0, %s24
      %s41 = sphi 0, %s25
      %s45 = sphi 0, %s45
      %s47 = sphi 0, %s45
      %s48 = sphi 0, %s47
      %s62 = sphi 0, %s48
      %s66 = sphi 0, %s66
      %s68 = sphi 0, %s66
      %s69 = sphi 0, %s68
      %s83 = sphi 0, %s69
      %s87 = sphi 0, %s87
      %s89 = sphi 0, %s87
      %s90 = sphi 0, %s89
      %s104 = sphi 0, %s90
      %s110 = sphi 0, %s112
      %s113 = sphi 0, %s110
      %s114 = sphi 0, %s113
      %s130 = sphi 0, %s114
    $region4: #{tpu_custom_call.1} parent=1 // loop_header_branch
      %14 = sbr.rel (%p12) target = $region8
    $region5: #{tpu_custom_call.1} parent=1 // loop_body
      %s16 = ssub.s32 %s11, 1
      %s17 = ssub.s32 %s11, 2
      %s18 = sadd.s32 %s11, 1
      %s19 = ssub.s32 %s11, %s18
      %p20 = scmp.eq.s32.totalorder %s19, 0
      %s22 = sadd.s32 %s21, 1
      %s23 = scalar_select %p20, %s21, %s22
      %p26 = pneg %p20
      %p27 = scmp.eq.s32.totalorder %s11, 1
      %p28 = por %p26, %p27
      %p29 = scmp.ne.s32.totalorder %s21, %s24
      %p30 = scmp.eq.s32.totalorder %s11, 0
      %p31 = por %p29, %p30
      %p32 = scmp.ne.s32.totalorder %s21, %s24
      %p33 = scmp.eq.s32.totalorder %s16, 1
      %p34 = por %p32, %p33
      %p35 = scmp.ne.s32.totalorder %s24, %s25
      %p36 = scmp.eq.s32.totalorder %s16, 0
      %p37 = por %p35, %p36
      %p38 = scmp.ne.s32.totalorder %s24, %s25
      %p39 = scmp.eq.s32.totalorder %s17, 1
      %p40 = por %p38, %p39
      %p42 = scmp.ne.s32.totalorder %s25, %s41
      %p43 = scmp.eq.s32.totalorder %s17, 0
      %p44 = por %p42, %p43
      %s46 = sadd.s32 %s45, 1
      %p49 = scmp.eq.s32.totalorder %s11, 1
      %p50 = scmp.ne.s32.totalorder %s45, %s47
      %p51 = scmp.eq.s32.totalorder %s11, 0
      %p52 = por %p50, %p51
      %p53 = scmp.ne.s32.totalorder %s45, %s47
      %p54 = scmp.eq.s32.totalorder %s16, 1
      %p55 = por %p53, %p54
      %p56 = scmp.ne.s32.totalorder %s47, %s48
      %p57 = scmp.eq.s32.totalorder %s16, 0
      %p58 = por %p56, %p57
      %p59 = scmp.ne.s32.totalorder %s47, %s48
      %p60 = scmp.eq.s32.totalorder %s17, 1
      %p61 = por %p59, %p60
      %p63 = scmp.ne.s32.totalorder %s48, %s62
      %p64 = scmp.eq.s32.totalorder %s17, 0
      %p65 = por %p63, %p64
      %s67 = sadd.s32 %s66, 1
      %p70 = scmp.eq.s32.totalorder %s11, 1
      %p71 = scmp.ne.s32.totalorder %s66, %s68
      %p72 = scmp.eq.s32.totalorder %s11, 0
      %p73 = por %p71, %p72
      %p74 = scmp.ne.s32.totalorder %s66, %s68
      %p75 = scmp.eq.s32.totalorder %s16, 1
      %p76 = por %p74, %p75
      %p77 = scmp.ne.s32.totalorder %s68, %s69
      %p78 = scmp.eq.s32.totalorder %s16, 0
      %p79 = por %p77, %p78
      %p80 = scmp.ne.s32.totalorder %s68, %s69
      %p81 = scmp.eq.s32.totalorder %s17, 1
      %p82 = por %p80, %p81
      %p84 = scmp.ne.s32.totalorder %s69, %s83
      %p85 = scmp.eq.s32.totalorder %s17, 0
      %p86 = por %p84, %p85
      %s88 = sadd.s32 %s87, 1
      %p91 = scmp.eq.s32.totalorder %s11, 1
      %p92 = scmp.ne.s32.totalorder %s87, %s89
      %p93 = scmp.eq.s32.totalorder %s11, 0
      %p94 = por %p92, %p93
      %p95 = scmp.ne.s32.totalorder %s87, %s89
      %p96 = scmp.eq.s32.totalorder %s16, 1
      %p97 = por %p95, %p96
      %p98 = scmp.ne.s32.totalorder %s89, %s90
      %p99 = scmp.eq.s32.totalorder %s16, 0
      %p100 = por %p98, %p99
      %p101 = scmp.ne.s32.totalorder %s89, %s90
      %p102 = scmp.eq.s32.totalorder %s17, 1
      %p103 = por %p101, %p102
      %p105 = scmp.ne.s32.totalorder %s90, %s104
      %p106 = scmp.eq.s32.totalorder %s17, 0
      %p107 = por %p105, %p106
      %s108 = ssub.s32 %s11, %s18
      %p109 = scmp.eq.s32.totalorder %s108, 0
      %s111 = sadd.s32 %s110, 1
      %s112 = scalar_select %p109, %s110, %s111
      %p115 = pneg %p109
      %p116 = scmp.eq.s32.totalorder %s11, 1
      %p117 = por %p115, %p116
      %p118 = scmp.ne.s32.totalorder %s110, %s113
      %p119 = scmp.eq.s32.totalorder %s11, 0
      %p120 = por %p118, %p119
      %p121 = scmp.ne.s32.totalorder %s110, %s113
      %p122 = scmp.eq.s32.totalorder %s16, 1
      %p123 = por %p121, %p122
      %p124 = scmp.ne.s32.totalorder %s113, %s114
      %p125 = scmp.eq.s32.totalorder %s16, 0
      %p126 = por %p124, %p125
      %p127 = scmp.ne.s32.totalorder %s113, %s114
      %p128 = scmp.eq.s32.totalorder %s17, 1
      %p129 = por %p127, %p128
      %p131 = scmp.ne.s32.totalorder %s114, %s130
      %p132 = scmp.eq.s32.totalorder %s17, 0
      %p133 = por %p131, %p132
      %p134 = scmp.le.s32.totalorder 1, %s11
      %p135 = scmp.lt.s32.totalorder %s11, 3
      %p136 = pnand %p134, %p135
      %p137 = pneg %p136
      // Predicated region
      $region9: #{tpu_custom_call.1} parent=5 // pred_check
        _
      $region10: #{tpu_custom_call.1} parent=5 // pred_check_branch
        %139 = sbr.rel (%p136) target = $region12
      $region11: #{tpu_custom_call.1} parent=5 // pred_region
        %s140 = ssub.s32 %s11, 1
        // Predicated region
        $region13: #{tpu_custom_call.1} parent=11 // pred_check
          %p141 = pneg %p58
        $region14: #{tpu_custom_call.1} parent=11 // pred_check_branch
          %143 = sbr.rel (%p141) target = $region16
        $region15: #{tpu_custom_call.1} parent=11 // pred_region
          _
        $region16: #{tpu_custom_call.1} parent=11 // pred_fallthru
          _
        // Predicated region
        $region17: #{tpu_custom_call.1} parent=11 // pred_check
          %p144 = pneg %p79
        $region18: #{tpu_custom_call.1} parent=11 // pred_check_branch
          %146 = sbr.rel (%p144) target = $region20
        $region19: #{tpu_custom_call.1} parent=11 // pred_region
          _
        $region20: #{tpu_custom_call.1} parent=11 // pred_fallthru
          _
        // Predicated region
        $region21: #{tpu_custom_call.1} parent=11 // pred_check
          %p147 = pneg %p100
        $region22: #{tpu_custom_call.1} parent=11 // pred_check_branch
          %149 = sbr.rel (%p147) target = $region24
        $region23: #{tpu_custom_call.1} parent=11 // pred_region
          _
        $region24: #{tpu_custom_call.1} parent=11 // pred_fallthru
          _
      $region12: #{tpu_custom_call.1} parent=5 // pred_fallthru
        _
      %p150 = scmp.lt.s32.totalorder %s11, 2
      // Predicated region
      $region25: #{tpu_custom_call.1} parent=5 // pred_check
        %p151 = pneg %p150
      $region26: #{tpu_custom_call.1} parent=5 // pred_check_branch
        %153 = sbr.rel (%p151) target = $region28
      $region27: #{tpu_custom_call.1} parent=5 // pred_region
        // Predicated region
        $region29: #{tpu_custom_call.1} parent=27 // pred_check
          %p154 = pneg %p31
        $region30: #{tpu_custom_call.1} parent=27 // pred_check_branch
          %156 = sbr.rel (%p154) target = $region32
        $region31: #{tpu_custom_call.1} parent=27 // pred_region
          %s157 = smul.u32 16, %s11
          %s158 = ssub.s32 25, %s157
          %p159 = scmp.lt.s32.totalorder %s158, 16
          %s160 = scalar_select %p159, %s158, 16
          %s161 = smul.u32 128, %s160
          %p162 = scmp.lt.s32.totalorder %s157, 24
          %s163 = scalar_select %p162, %s157, 24
          %s164 = smul.addr %s163, 8
          %s165 = scalar_lea.vmem %s0, %s164
          %s166 = smul.u32 16, %s11
          %s167 = ssub.s32 25, %s166
          %p168 = scmp.lt.s32.totalorder %s167, 16
          %s169 = scalar_select %p168, %s167, 16
          %s170 = smul.u32 128, %s169
        $region32: #{tpu_custom_call.1} parent=27 // pred_fallthru
          _
      $region28: #{tpu_custom_call.1} parent=5 // pred_fallthru
        _
      %p171 = scmp.le.s32.totalorder 1, %s11
      %p172 = scmp.lt.s32.totalorder %s11, 3
      %p173 = pnand %p171, %p172
      %p174 = pneg %p173
      // Predicated region
      $region33: #{tpu_custom_call.1} parent=5 // pred_check
        _
      $region34: #{tpu_custom_call.1} parent=5 // pred_check_branch
        %176 = sbr.rel (%p173) target = $region36
      $region35: #{tpu_custom_call.1} parent=5 // pred_region
        %s177 = ssub.s32 %s11, 1
        %s178 = smul.u32 16, %s16
        %s179 = ssub.s32 25, %s178
        %p180 = scmp.lt.s32.totalorder %s179, 16
        %s181 = scalar_select %p180, %s179, 16
        %s182 = smul.u32 128, %s181
        %p183 = scmp.lt.s32.totalorder %s178, 24
        %s184 = scalar_select %p183, %s178, 24
        %s185 = smul.addr %s184, 8
        %s186 = scalar_lea.vmem %s0, %s185
        %p187 = pneg %p37
        %p188 = pneg %p34
        %p189 = pneg %p58
        %p190 = pneg %p55
        %p191 = pneg %p79
        %p192 = pneg %p76
        %p193 = pneg %p100
        %p194 = pneg %p97
        %p195 = pneg %p126
        %p196 = pneg %p123
        %s197 = sand.u32 %s113, 1
        %s198 = sand.u32 %s113, 1
        %s199 = smul.addr %s198, 128
        %s200 = scalar_lea.vmem [#allocation3], %s199
        %s201 = smul.u32 16, %s16
        %s202 = ssub.s32 25, %s201
        %p203 = scmp.lt.s32.totalorder %s202, 16
        %s204 = scalar_select %p203, %s202, 16
        %s205 = smul.u32 128, %s204
        %p206 = scmp.lt.s32.totalorder %s201, 24
        %s207 = scalar_select %p206, %s201, 24
        %s208 = smul.addr %s207, 8
        %s209 = scalar_lea.vmem %s0, %s208
        %s210 = smul.u32 16, %s16
        %s211 = ssub.s32 25, %s210
        %p212 = scmp.lt.s32.totalorder %s211, 16
        %s213 = scalar_select %p212, %s211, 16
        %s214 = smul.u32 128, %s213
        %s215 = smul.u32 16, %s16
        %s216 = ssub.s32 25, %s215
        %p217 = scmp.lt.s32.totalorder %s216, 16
        %s218 = scalar_select %p217, %s216, 16
        %s219 = smul.u32 128, %s218
        %v220 = vld [vmem:[%s209] sm:$0xff]
        %v221 = vld [vmem:[%s209 + $0x8] sm:$0xff]
        %v222 = vld [vmem:[%s209 + $0x10] sm:$0xff]
        %v223 = vld [vmem:[%s209 + $0x18] sm:$0xff]
        %v224 = vld [vmem:[%s209 + $0x20] sm:$0xff]
        %v225 = vld [vmem:[%s209 + $0x28] sm:$0xff]
        %v226 = vld [vmem:[%s209 + $0x30] sm:$0xff]
        %v227 = vld [vmem:[%s209 + $0x38] sm:$0xff]
        %v228 = vld [vmem:[%s209 + $0x40] sm:$0xff]
        %v229 = vld [vmem:[%s209 + $0x48] sm:$0xff]
        %v230 = vld [vmem:[%s209 + $0x50] sm:$0xff]
        %v231 = vld [vmem:[%s209 + $0x58] sm:$0xff]
        %v232 = vld [vmem:[%s209 + $0x60] sm:$0xff]
        %v233 = vld [vmem:[%s209 + $0x68] sm:$0xff]
        %v234 = vld [vmem:[%s209 + $0x70] sm:$0xff]
        %v235 = vld [vmem:[%s209 + $0x78] sm:$0xff]
        %v236 = vld [vmem:[%s1] sm:$0xff]
        %v237 = vld [vmem:[%s1 + $0x8] sm:$0xff]
        %v238 = vld [vmem:[%s1 + $0x10] sm:$0xff]
        %v239 = vld [vmem:[%s1 + $0x18] sm:$0xff]
        %v240 = vld [vmem:[%s2] sm:$0xff]
        %v241 = vld [vmem:[%s2 + $0x8] sm:$0xff]
        %v242 = vld [vmem:[%s2 + $0x10] sm:$0xff]
        %v243 = vld [vmem:[%s2 + $0x18] sm:$0xff]
        %s244 = sld [smem:[#allocation2]]
        %vm245 = vcmask 261120
        %v247 = vsel %vm245, %v220, 0
        %v250 = vsel %vm245, %v221, 0
        %v253 = vsel %vm245, %v222, 0
        %v256 = vsel %vm245, %v223, 0
        %v259 = vsel %vm245, %v224, 0
        %v262 = vsel %vm245, %v225, 0
        %v265 = vsel %vm245, %v226, 0
        %v268 = vsel %vm245, %v227, 0
        %v271 = vsel %vm245, %v228, 0
        %v274 = vsel %vm245, %v229, 0
        %v277 = vsel %vm245, %v230, 0
        %v280 = vsel %vm245, %v231, 0
        %v283 = vsel %vm245, %v232, 0
        %v286 = vsel %vm245, %v233, 0
        %v289 = vsel %vm245, %v234, 0
        %v292 = vsel %vm245, %v235, 0
        %294 = vmatprep.subr.mxu0 0.0
        %295 = vmatpush1.msra.mxu0 %v236
        %296 = vmatprep.subr.mxu0 0.0
        %297 = vmatpush1.msra.mxu0 %v237
        %298 = vmatprep.subr.mxu0 0.0
        %299 = vmatpush1.msra.mxu0 %v238
        %300 = vmatprep.subr.mxu0 0.0
        %301 = vmatpush1.msra.mxu0 %v239
        %302 = vmatprep.subr.mxu0 0.0
        %303 = vmatpush1.msra.mxu0 0.0
        %304 = vmatprep.subr.mxu0 0.0
        %305 = vmatpush1.msra.mxu0 0.0
        %306 = vmatprep.subr.mxu0 0.0
        %307 = vmatpush1.msra.mxu0 0.0
        %308 = vmatprep.subr.mxu0 0.0
        %309 = vmatpush1.msra.mxu0 0.0
        %310 = vmatprep.subr.mxu0 0.0
        %311 = vmatpush1.msra.mxu0 0.0
        %312 = vmatprep.subr.mxu0 0.0
        %313 = vmatpush1.msra.mxu0 0.0
        %314 = vmatprep.subr.mxu0 0.0
        %315 = vmatpush1.msra.mxu0 0.0
        %316 = vmatprep.subr.mxu0 0.0
        %317 = vmatpush1.msra.mxu0 0.0
        %318 = vmatprep.subr.mxu0 0.0
        %319 = vmatpush1.msra.mxu0 0.0
        %320 = vmatprep.subr.mxu0 0.0
        %321 = vmatpush1.msra.mxu0 0.0
        %322 = vmatprep.subr.mxu0 0.0
        %323 = vmatpush1.msra.mxu0 0.0
        %324 = vmatprep.subr.mxu0 0.0
        %325 = vmatpush1.msra.mxu0 0.0
        %326 = vmatprep.subr.mxu0 0.0
        %327 = vmatpush1.msra.mxu0 0.0
        %328 = vmatprep.subr.mxu0 0.0
        %329 = vmatpush1.msra.mxu0 0.0
        %330 = vmatprep.subr.mxu0 0.0
        %331 = vmatpush1.msra.mxu0 0.0
        %332 = vmatprep.subr.mxu0 0.0
        %333 = vmatpush1.msra.mxu0 0.0
        %334 = vmatprep.subr.mxu0 0.0
        %335 = vmatpush1.msra.mxu0 0.0
        %336 = vmatprep.subr.mxu0 0.0
        %337 = vmatpush1.msra.mxu0 0.0
        %338 = vmatprep.subr.mxu0 0.0
        %339 = vmatpush1.msra.mxu0 0.0
        %340 = vmatprep.subr.mxu0 0.0
        %341 = vmatpush1.msra.mxu0 0.0
        %342 = vmatprep.subr.mxu0 0.0
        %343 = vmatpush1.msra.mxu0 0.0
        %344 = vmatprep.subr.mxu0 0.0
        %345 = vmatpush1.msra.mxu0 0.0
        %346 = vmatprep.subr.mxu0 0.0
        %347 = vmatpush1.msra.mxu0 0.0
        %348 = vmatprep.subr.mxu0 0.0
        %349 = vmatpush1.msra.mxu0 0.0
        %350 = vmatprep.subr.mxu0 0.0
        %351 = vmatpush1.msra.mxu0 0.0
        %352 = vmatprep.subr.mxu0 0.0
        %353 = vmatpush1.msra.mxu0 0.0
        %354 = vmatprep.subr.mxu0 0.0
        %355 = vmatpush1.msra.mxu0 0.0
        %356 = vmatprep.subr.mxu0 0.0
        %357 = vmatpush1.msra.mxu0 0.0
        %358 = vmatprep.mubr.f32.mxu0 0.0
        %359 = vmatmul.mubr.f32.gmra.mrb[0].mxu0 %v247
        %v360 = vpop.f32.mrb[0].mxu0
        %v361 = vadd.f32 0.0, %v360
        %v362 = vpop.f32.mrb[0].mxu0
        %363 = vmatprep.mubr.f32.mxu0 0.0
        %364 = vmatmul.mubr.f32.gmra.mrb[0].mxu0 %v250
        %v365 = vpop.f32.mrb[0].mxu0
        %v366 = vadd.f32 0.0, %v365
        %v367 = vpop.f32.mrb[0].mxu0
        %368 = vmatprep.mubr.f32.mxu0 0.0
        %369 = vmatmul.mubr.f32.gmra.mrb[0].mxu0 %v253
        %v370 = vpop.f32.mrb[0].mxu0
        %v371 = vadd.f32 0.0, %v370
        %v372 = vpop.f32.mrb[0].mxu0
        %373 = vmatprep.mubr.f32.mxu0 0.0
        %374 = vmatmul.mubr.f32.gmra.mrb[0].mxu0 %v256
        %v375 = vpop.f32.mrb[0].mxu0
        %v376 = vadd.f32 0.0, %v375
        %v377 = vpop.f32.mrb[0].mxu0
        %378 = vmatprep.mubr.f32.mxu0 0.0
        %379 = vmatmul.mubr.f32.gmra.mrb[0].mxu0 %v259
        %v380 = vpop.f32.mrb[0].mxu0
        %v381 = vadd.f32 0.0, %v380
        %v382 = vpop.f32.mrb[0].mxu0
        %383 = vmatprep.mubr.f32.mxu0 0.0
        %384 = vmatmul.mubr.f32.gmra.mrb[0].mxu0 %v262
        %v385 = vpop.f32.mrb[0].mxu0
        %v386 = vadd.f32 0.0, %v385
        %v387 = vpop.f32.mrb[0].mxu0
        %388 = vmatprep.mubr.f32.mxu0 0.0
        %389 = vmatmul.mubr.f32.gmra.mrb[0].mxu0 %v265
        %v390 = vpop.f32.mrb[0].mxu0
        %v391 = vadd.f32 0.0, %v390
        %v392 = vpop.f32.mrb[0].mxu0
        %393 = vmatprep.mubr.f32.mxu0 0.0
        %394 = vmatmul.mubr.f32.gmra.mrb[0].mxu0 %v268
        %v395 = vpop.f32.mrb[0].mxu0
        %v396 = vadd.f32 0.0, %v395
        %v397 = vpop.f32.mrb[0].mxu0
        %398 = vmatprep.mubr.f32.mxu0 0.0
        %399 = vmatmul.mubr.f32.gmra.mrb[0].mxu0 %v271
        %v400 = vpop.f32.mrb[0].mxu0
        %v401 = vadd.f32 0.0, %v400
        %v402 = vpop.f32.mrb[0].mxu0
        %403 = vmatprep.mubr.f32.mxu0 0.0
        %404 = vmatmul.mubr.f32.gmra.mrb[0].mxu0 %v274
        %v405 = vpop.f32.mrb[0].mxu0
        %v406 = vadd.f32 0.0, %v405
        %v407 = vpop.f32.mrb[0].mxu0
        %408 = vmatprep.mubr.f32.mxu0 0.0
        %409 = vmatmul.mubr.f32.gmra.mrb[0].mxu0 %v277
        %v410 = vpop.f32.mrb[0].mxu0
        %v411 = vadd.f32 0.0, %v410
        %v412 = vpop.f32.mrb[0].mxu0
        %413 = vmatprep.mubr.f32.mxu0 0.0
        %414 = vmatmul.mubr.f32.gmra.mrb[0].mxu0 %v280
        %v415 = vpop.f32.mrb[0].mxu0
        %v416 = vadd.f32 0.0, %v415
        %v417 = vpop.f32.mrb[0].mxu0
        %418 = vmatprep.mubr.f32.mxu0 0.0
        %419 = vmatmul.mubr.f32.gmra.mrb[0].mxu0 %v283
        %v420 = vpop.f32.mrb[0].mxu0
        %v421 = vadd.f32 0.0, %v420
        %v422 = vpop.f32.mrb[0].mxu0
        %423 = vmatprep.mubr.f32.mxu0 0.0
        %424 = vmatmul.mubr.f32.gmra.mrb[0].mxu0 %v286
        %v425 = vpop.f32.mrb[0].mxu0
        %v426 = vadd.f32 0.0, %v425
        %v427 = vpop.f32.mrb[0].mxu0
        %428 = vmatprep.mubr.f32.mxu0 0.0
        %429 = vmatmul.mubr.f32.gmra.mrb[0].mxu0 %v289
        %v430 = vpop.f32.mrb[0].mxu0
        %v431 = vadd.f32 0.0, %v430
        %v432 = vpop.f32.mrb[0].mxu0
        %433 = vmatprep.mubr.f32.mxu0 0.0
        %434 = vmatmul.mubr.f32.gmra.mrb[0].mxu0 %v292
        %v435 = vpop.f32.mrb[0].mxu0
        %v436 = vadd.f32 0.0, %v435
        %v437 = vpop.f32.mrb[0].mxu0
        %438 = vdwg.mxu0
        %v439 = vlaneseq
        %v440 = vand.u32 %v439, 127
        %vm441 = vcmp.lt.s32.totalorder %v440, 16
        %v442 = vmul.f32 %v361, 0.5
        %v443 = vmul.f32 %v366, 0.5
        %v444 = vmul.f32 %v371, 0.5
        %v445 = vmul.f32 %v376, 0.5
        %v446 = vmul.f32 %v381, 0.5
        %v447 = vmul.f32 %v386, 0.5
        %v448 = vmul.f32 %v391, 0.5
        %v449 = vmul.f32 %v396, 0.5
        %v450 = vmul.f32 %v401, 0.5
        %v451 = vmul.f32 %v406, 0.5
        %v452 = vmul.f32 %v411, 0.5
        %v453 = vmul.f32 %v416, 0.5
        %v454 = vmul.f32 %v421, 0.5
        %v455 = vmul.f32 %v426, 0.5
        %v456 = vmul.f32 %v431, 0.5
        %v457 = vmul.f32 %v436, 0.5
        %v458 = vmul.f32 %v442, %v361
        %v459 = vmul.f32 %v443, %v366
        %v460 = vmul.f32 %v444, %v371
        %v461 = vmul.f32 %v445, %v376
        %v462 = vmul.f32 %v446, %v381
        %v463 = vmul.f32 %v447, %v386
        %v464 = vmul.f32 %v448, %v391
        %v465 = vmul.f32 %v449, %v396
        %v466 = vmul.f32 %v450, %v401
        %v467 = vmul.f32 %v451, %v406
        %v468 = vmul.f32 %v452, %v411
        %v469 = vmul.f32 %v453, %v416
        %v470 = vmul.f32 %v454, %v421
        %v471 = vmul.f32 %v455, %v426
        %v472 = vmul.f32 %v456, %v431
        %v473 = vmul.f32 %v457, %v436
        %v474 = vsel %vm441, %v458, %v361
        %v475 = vsel %vm441, %v459, %v366
        %v476 = vsel %vm441, %v460, %v371
        %v477 = vsel %vm441, %v461, %v376
        %v478 = vsel %vm441, %v462, %v381
        %v479 = vsel %vm441, %v463, %v386
        %v480 = vsel %vm441, %v464, %v391
        %v481 = vsel %vm441, %v465, %v396
        %v482 = vsel %vm441, %v466, %v401
        %v483 = vsel %vm441, %v467, %v406
        %v484 = vsel %vm441, %v468, %v411
        %v485 = vsel %vm441, %v469, %v416
        %v486 = vsel %vm441, %v470, %v421
        %v487 = vsel %vm441, %v471, %v426
        %v488 = vsel %vm441, %v472, %v431
        %v489 = vsel %vm441, %v473, %v436
        %vm490 = vcmask 138240
        %v491 = vsel %vm490, %v474, 0.0
        %492 = vadd.xlane.f32.xlu0 %v491
        %v493 = vpop.xlane.xlu0 %492
        %v494 = vsel %vm490, %v475, 0.0
        %495 = vadd.xlane.f32.xlu0 %v494
        %v496 = vpop.xlane.xlu0 %495
        %v497 = vsel %vm490, %v476, 0.0
        %498 = vadd.xlane.f32.xlu0 %v497
        %v499 = vpop.xlane.xlu0 %498
        %v500 = vsel %vm490, %v477, 0.0
        %501 = vadd.xlane.f32.xlu0 %v500
        %v502 = vpop.xlane.xlu0 %501
        %v503 = vsel %vm490, %v478, 0.0
        %504 = vadd.xlane.f32.xlu0 %v503
        %v505 = vpop.xlane.xlu0 %504
        %v506 = vsel %vm490, %v479, 0.0
        %507 = vadd.xlane.f32.xlu0 %v506
        %v508 = vpop.xlane.xlu0 %507
        %v509 = vsel %vm490, %v480, 0.0
        %510 = vadd.xlane.f32.xlu0 %v509
        %v511 = vpop.xlane.xlu0 %510
        %v512 = vsel %vm490, %v481, 0.0
        %513 = vadd.xlane.f32.xlu0 %v512
        %v514 = vpop.xlane.xlu0 %513
        %v515 = vsel %vm490, %v482, 0.0
        %516 = vadd.xlane.f32.xlu0 %v515
        %v517 = vpop.xlane.xlu0 %516
        %v518 = vsel %vm490, %v483, 0.0
        %519 = vadd.xlane.f32.xlu0 %v518
        %v520 = vpop.xlane.xlu0 %519
        %v521 = vsel %vm490, %v484, 0.0
        %522 = vadd.xlane.f32.xlu0 %v521
        %v523 = vpop.xlane.xlu0 %522
        %v524 = vsel %vm490, %v485, 0.0
        %525 = vadd.xlane.f32.xlu0 %v524
        %v526 = vpop.xlane.xlu0 %525
        %v527 = vsel %vm490, %v486, 0.0
        %528 = vadd.xlane.f32.xlu0 %v527
        %v529 = vpop.xlane.xlu0 %528
        %v530 = vsel %vm490, %v487, 0.0
        %531 = vadd.xlane.f32.xlu0 %v530
        %v532 = vpop.xlane.xlu0 %531
        %v533 = vsel %vm490, %v488, 0.0
        %534 = vadd.xlane.f32.xlu0 %v533
        %v535 = vpop.xlane.xlu0 %534
        %v536 = vsel %vm490, %v489, 0.0
        %537 = vadd.xlane.f32.xlu0 %v536
        %v538 = vpop.xlane.xlu0 %537
        %v539 = vmul.f32 %v220, %v220
        %v540 = vmul.f32 %v221, %v221
        %v541 = vmul.f32 %v222, %v222
        %v542 = vmul.f32 %v223, %v223
        %v543 = vmul.f32 %v224, %v224
        %v544 = vmul.f32 %v225, %v225
        %v545 = vmul.f32 %v226, %v226
        %v546 = vmul.f32 %v227, %v227
        %v547 = vmul.f32 %v228, %v228
        %v548 = vmul.f32 %v229, %v229
        %v549 = vmul.f32 %v230, %v230
        %v550 = vmul.f32 %v231, %v231
        %v551 = vmul.f32 %v232, %v232
        %v552 = vmul.f32 %v233, %v233
        %v553 = vmul.f32 %v234, %v234
        %v554 = vmul.f32 %v235, %v235
        %v556 = vsel %vm245, %v539, 0
        %v559 = vsel %vm245, %v540, 0
        %v562 = vsel %vm245, %v541, 0
        %v565 = vsel %vm245, %v542, 0
        %v568 = vsel %vm245, %v543, 0
        %v571 = vsel %vm245, %v544, 0
        %v574 = vsel %vm245, %v545, 0
        %v577 = vsel %vm245, %v546, 0
        %v580 = vsel %vm245, %v547, 0
        %v583 = vsel %vm245, %v548, 0
        %v586 = vsel %vm245, %v549, 0
        %v589 = vsel %vm245, %v550, 0
        %v592 = vsel %vm245, %v551, 0
        %v595 = vsel %vm245, %v552, 0
        %v598 = vsel %vm245, %v553, 0
        %v601 = vsel %vm245, %v554, 0
        %603 = vmatprep.subr.mxu0 0.0
        %604 = vmatpush1.msra.mxu0 %v240
        %605 = vmatprep.subr.mxu0 0.0
        %606 = vmatpush1.msra.mxu0 %v241
        %607 = vmatprep.subr.mxu0 0.0
        %608 = vmatpush1.msra.mxu0 %v242
        %609 = vmatprep.subr.mxu0 0.0
        %610 = vmatpush1.msra.mxu0 %v243
        %611 = vmatprep.subr.mxu0 0.0
        %612 = vmatpush1.msra.mxu0 0.0
        %613 = vmatprep.subr.mxu0 0.0
        %614 = vmatpush1.msra.mxu0 0.0
        %615 = vmatprep.subr.mxu0 0.0
        %616 = vmatpush1.msra.mxu0 0.0
        %617 = vmatprep.subr.mxu0 0.0
        %618 = vmatpush1.msra.mxu0 0.0
        %619 = vmatprep.subr.mxu0 0.0
        %620 = vmatpush1.msra.mxu0 0.0
        %621 = vmatprep.subr.mxu0 0.0
        %622 = vmatpush1.msra.mxu0 0.0
        %623 = vmatprep.subr.mxu0 0.0
        %624 = vmatpush1.msra.mxu0 0.0
        %625 = vmatprep.subr.mxu0 0.0
        %626 = vmatpush1.msra.mxu0 0.0
        %627 = vmatprep.subr.mxu0 0.0
        %628 = vmatpush1.msra.mxu0 0.0
        %629 = vmatprep.subr.mxu0 0.0
        %630 = vmatpush1.msra.mxu0 0.0
        %631 = vmatprep.subr.mxu0 0.0
        %632 = vmatpush1.msra.mxu0 0.0
        %633 = vmatprep.subr.mxu0 0.0
        %634 = vmatpush1.msra.mxu0 0.0
        %635 = vmatprep.subr.mxu0 0.0
        %636 = vmatpush1.msra.mxu0 0.0
        %637 = vmatprep.subr.mxu0 0.0
        %638 = vmatpush1.msra.mxu0 0.0
        %639 = vmatprep.subr.mxu0 0.0
        %640 = vmatpush1.msra.mxu0 0.0
        %641 = vmatprep.subr.mxu0 0.0
        %642 = vmatpush1.msra.mxu0 0.0
        %643 = vmatprep.subr.mxu0 0.0
        %644 = vmatpush1.msra.mxu0 0.0
        %645 = vmatprep.subr.mxu0 0.0
        %646 = vmatpush1.msra.mxu0 0.0
        %647 = vmatprep.subr.mxu0 0.0
        %648 = vmatpush1.msra.mxu0 0.0
        %649 = vmatprep.subr.mxu0 0.0
        %650 = vmatpush1.msra.mxu0 0.0
        %651 = vmatprep.subr.mxu0 0.0
        %652 = vmatpush1.msra.mxu0 0.0
        %653 = vmatprep.subr.mxu0 0.0
        %654 = vmatpush1.msra.mxu0 0.0
        %655 = vmatprep.subr.mxu0 0.0
        %656 = vmatpush1.msra.mxu0 0.0
        %657 = vmatprep.subr.mxu0 0.0
        %658 = vmatpush1.msra.mxu0 0.0
        %659 = vmatprep.subr.mxu0 0.0
        %660 = vmatpush1.msra.mxu0 0.0
        %661 = vmatprep.subr.mxu0 0.0
        %662 = vmatpush1.msra.mxu0 0.0
        %663 = vmatprep.subr.mxu0 0.0
        %664 = vmatpush1.msra.mxu0 0.0
        %665 = vmatprep.subr.mxu0 0.0
        %666 = vmatpush1.msra.mxu0 0.0
        %667 = vmatprep.mubr.f32.mxu0 0.0
        %668 = vmatmul.mubr.f32.gmra.mrb[0].mxu0 %v556
        %v669 = vpop.f32.mrb[0].mxu0
        %v670 = vadd.f32 0.0, %v669
        %v671 = vpop.f32.mrb[0].mxu0
        %672 = vmatprep.mubr.f32.mxu0 0.0
        %673 = vmatmul.mubr.f32.gmra.mrb[0].mxu0 %v559
        %v674 = vpop.f32.mrb[0].mxu0
        %v675 = vadd.f32 0.0, %v674
        %v676 = vpop.f32.mrb[0].mxu0
        %677 = vmatprep.mubr.f32.mxu0 0.0
        %678 = vmatmul.mubr.f32.gmra.mrb[0].mxu0 %v562
        %v679 = vpop.f32.mrb[0].mxu0
        %v680 = vadd.f32 0.0, %v679
        %v681 = vpop.f32.mrb[0].mxu0
        %682 = vmatprep.mubr.f32.mxu0 0.0
        %683 = vmatmul.mubr.f32.gmra.mrb[0].mxu0 %v565
        %v684 = vpop.f32.mrb[0].mxu0
        %v685 = vadd.f32 0.0, %v684
        %v686 = vpop.f32.mrb[0].mxu0
        %687 = vmatprep.mubr.f32.mxu0 0.0
        %688 = vmatmul.mubr.f32.gmra.mrb[0].mxu0 %v568
        %v689 = vpop.f32.mrb[0].mxu0
        %v690 = vadd.f32 0.0, %v689
        %v691 = vpop.f32.mrb[0].mxu0
        %692 = vmatprep.mubr.f32.mxu0 0.0
        %693 = vmatmul.mubr.f32.gmra.mrb[0].mxu0 %v571
        %v694 = vpop.f32.mrb[0].mxu0
        %v695 = vadd.f32 0.0, %v694
        %v696 = vpop.f32.mrb[0].mxu0
        %697 = vmatprep.mubr.f32.mxu0 0.0
        %698 = vmatmul.mubr.f32.gmra.mrb[0].mxu0 %v574
        %v699 = vpop.f32.mrb[0].mxu0
        %v700 = vadd.f32 0.0, %v699
        %v701 = vpop.f32.mrb[0].mxu0
        %702 = vmatprep.mubr.f32.mxu0 0.0
        %703 = vmatmul.mubr.f32.gmra.mrb[0].mxu0 %v577
        %v704 = vpop.f32.mrb[0].mxu0
        %v705 = vadd.f32 0.0, %v704
        %v706 = vpop.f32.mrb[0].mxu0
        %707 = vmatprep.mubr.f32.mxu0 0.0
        %708 = vmatmul.mubr.f32.gmra.mrb[0].mxu0 %v580
        %v709 = vpop.f32.mrb[0].mxu0
        %v710 = vadd.f32 0.0, %v709
        %v711 = vpop.f32.mrb[0].mxu0
        %712 = vmatprep.mubr.f32.mxu0 0.0
        %713 = vmatmul.mubr.f32.gmra.mrb[0].mxu0 %v583
        %v714 = vpop.f32.mrb[0].mxu0
        %v715 = vadd.f32 0.0, %v714
        %v716 = vpop.f32.mrb[0].mxu0
        %717 = vmatprep.mubr.f32.mxu0 0.0
        %718 = vmatmul.mubr.f32.gmra.mrb[0].mxu0 %v586
        %v719 = vpop.f32.mrb[0].mxu0
        %v720 = vadd.f32 0.0, %v719
        %v721 = vpop.f32.mrb[0].mxu0
        %722 = vmatprep.mubr.f32.mxu0 0.0
        %723 = vmatmul.mubr.f32.gmra.mrb[0].mxu0 %v589
        %v724 = vpop.f32.mrb[0].mxu0
        %v725 = vadd.f32 0.0, %v724
        %v726 = vpop.f32.mrb[0].mxu0
        %727 = vmatprep.mubr.f32.mxu0 0.0
        %728 = vmatmul.mubr.f32.gmra.mrb[0].mxu0 %v592
        %v729 = vpop.f32.mrb[0].mxu0
        %v730 = vadd.f32 0.0, %v729
        %v731 = vpop.f32.mrb[0].mxu0
        %732 = vmatprep.mubr.f32.mxu0 0.0
        %733 = vmatmul.mubr.f32.gmra.mrb[0].mxu0 %v595
        %v734 = vpop.f32.mrb[0].mxu0
        %v735 = vadd.f32 0.0, %v734
        %v736 = vpop.f32.mrb[0].mxu0
        %737 = vmatprep.mubr.f32.mxu0 0.0
        %738 = vmatmul.mubr.f32.gmra.mrb[0].mxu0 %v598
        %v739 = vpop.f32.mrb[0].mxu0
        %v740 = vadd.f32 0.0, %v739
        %v741 = vpop.f32.mrb[0].mxu0
        %742 = vmatprep.mubr.f32.mxu0 0.0
        %743 = vmatmul.mubr.f32.gmra.mrb[0].mxu0 %v601
        %v744 = vpop.f32.mrb[0].mxu0
        %v745 = vadd.f32 0.0, %v744
        %v746 = vpop.f32.mrb[0].mxu0
        %747 = vdwg.mxu0
        %v748 = vmul.f32 %v670, 0.5
        %v749 = vmul.f32 %v675, 0.5
        %v750 = vmul.f32 %v680, 0.5
        %v751 = vmul.f32 %v685, 0.5
        %v752 = vmul.f32 %v690, 0.5
        %v753 = vmul.f32 %v695, 0.5
        %v754 = vmul.f32 %v700, 0.5
        %v755 = vmul.f32 %v705, 0.5
        %v756 = vmul.f32 %v710, 0.5
        %v757 = vmul.f32 %v715, 0.5
        %v758 = vmul.f32 %v720, 0.5
        %v759 = vmul.f32 %v725, 0.5
        %v760 = vmul.f32 %v730, 0.5
        %v761 = vmul.f32 %v735, 0.5
        %v762 = vmul.f32 %v740, 0.5
        %v763 = vmul.f32 %v745, 0.5
        %v764 = vsub.f32 %v493, %v748
        %v765 = vsub.f32 %v496, %v749
        %v766 = vsub.f32 %v499, %v750
        %v767 = vsub.f32 %v502, %v751
        %v768 = vsub.f32 %v505, %v752
        %v769 = vsub.f32 %v508, %v753
        %v770 = vsub.f32 %v511, %v754
        %v771 = vsub.f32 %v514, %v755
        %v772 = vsub.f32 %v517, %v756
        %v773 = vsub.f32 %v520, %v757
        %v774 = vsub.f32 %v523, %v758
        %v775 = vsub.f32 %v526, %v759
        %v776 = vsub.f32 %v529, %v760
        %v777 = vsub.f32 %v532, %v761
        %v778 = vsub.f32 %v535, %v762
        %v779 = vsub.f32 %v538, %v763
        %v780 = vstv %s244
        %v781 = vadd.f32 %v764, %v780
        %v782 = vadd.f32 %v765, %v780
        %v783 = vadd.f32 %v766, %v780
        %v784 = vadd.f32 %v767, %v780
        %v785 = vadd.f32 %v768, %v780
        %v786 = vadd.f32 %v769, %v780
        %v787 = vadd.f32 %v770, %v780
        %v788 = vadd.f32 %v771, %v780
        %v789 = vadd.f32 %v772, %v780
        %v790 = vadd.f32 %v773, %v780
        %v791 = vadd.f32 %v774, %v780
        %v792 = vadd.f32 %v775, %v780
        %v793 = vadd.f32 %v776, %v780
        %v794 = vadd.f32 %v777, %v780
        %v795 = vadd.f32 %v778, %v780
        %v796 = vadd.f32 %v779, %v780
        %vm797 = vcmask 7168
        %798 = vst.msk [vmem:[%s200] sm:$0xff] %vm797, %v781
        %799 = vst.msk [vmem:[%s200 + $0x8] sm:$0xff] %vm797, %v782
        %800 = vst.msk [vmem:[%s200 + $0x10] sm:$0xff] %vm797, %v783
        %801 = vst.msk [vmem:[%s200 + $0x18] sm:$0xff] %vm797, %v784
        %802 = vst.msk [vmem:[%s200 + $0x20] sm:$0xff] %vm797, %v785
        %803 = vst.msk [vmem:[%s200 + $0x28] sm:$0xff] %vm797, %v786
        %804 = vst.msk [vmem:[%s200 + $0x30] sm:$0xff] %vm797, %v787
        %805 = vst.msk [vmem:[%s200 + $0x38] sm:$0xff] %vm797, %v788
        %806 = vst.msk [vmem:[%s200 + $0x40] sm:$0xff] %vm797, %v789
        %807 = vst.msk [vmem:[%s200 + $0x48] sm:$0xff] %vm797, %v790
        %808 = vst.msk [vmem:[%s200 + $0x50] sm:$0xff] %vm797, %v791
        %809 = vst.msk [vmem:[%s200 + $0x58] sm:$0xff] %vm797, %v792
        %810 = vst.msk [vmem:[%s200 + $0x60] sm:$0xff] %vm797, %v793
        %811 = vst.msk [vmem:[%s200 + $0x68] sm:$0xff] %vm797, %v794
        %812 = vst.msk [vmem:[%s200 + $0x70] sm:$0xff] %vm797, %v795
        %813 = vst.msk [vmem:[%s200 + $0x78] sm:$0xff] %vm797, %v796
        %s814 = sand.u32 %s113, 1
        %s815 = sand.u32 %s113, 1
        %s816 = smul.addr %s815, 128
        %s817 = scalar_lea.vmem [#allocation3], %s816
        // Predicated region
        $region37: #{tpu_custom_call.1} parent=35 // pred_check
          %p818 = pneg %p123
        $region38: #{tpu_custom_call.1} parent=35 // pred_check_branch
          %820 = sbr.rel (%p818) target = $region40
        $region39: #{tpu_custom_call.1} parent=35 // pred_region
          %s821 = smul.u32 16, %s16
          %s822 = ssub.s32 25, %s821
          %p823 = scmp.lt.s32.totalorder %s822, 16
          %s824 = scalar_select %p823, %s822, 16
          %s825 = smul.u32 128, %s824
          %p826 = scmp.ne.s32.totalorder 0, %s825
          %s827 = smul.addr %s821, 8
          %s828 = scalar_lea.vmem %s4, %s827
          // Predicated region
          $region41: #{tpu_custom_call.1} parent=39 // pred_check
            %p829 = pneg %p826
          $region42: #{tpu_custom_call.1} parent=39 // pred_check_branch
            %831 = sbr.rel (%p829) target = $region44
          $region43: #{tpu_custom_call.1} parent=39 // pred_region
            // Predicated region
            $region45: #{tpu_custom_call.1} parent=43 // pred_check
              _
            $region46: #{tpu_custom_call.1} parent=43 // pred_check_branch
              %833 = sbr.rel (0) target = $region48
            $region47: #{tpu_custom_call.1} parent=43 // pred_region
              // Predicated region
              $region67: #{tpu_custom_call.1} parent=47 // pred_check
                _
              $region68: #{tpu_custom_call.1} parent=47 // pred_check_branch
                %912 = sbr.rel (0) target = $region70
              $region69: #{tpu_custom_call.1} parent=47 // pred_region
                %s913 = sshrl.u32 %s824, 4
                // While loop
                $region71: #{tpu_custom_call.1} parent=69 // loop_pre_header
                  _
                $region72: #{tpu_custom_call.1} parent=69 // loop_header
                  %s915 = sphi 0, %s917
                  %p916 = scmp.ge.s32.totalorder %s915, %s913
                  %s920 = sphi 0, %s957
                  %s921 = sphi %s817, %s960
                  %s922 = sphi %s828, %s961
                $region73: #{tpu_custom_call.1} parent=69 // loop_header_branch
                  %919 = sbr.rel (%p916) target = $region77
                $region74: #{tpu_custom_call.1} parent=69 // loop_body
                  %v923 = vld [vmem:[%s921] sm:$0xff]
                  %924 = vst [vmem:[%s922] sm:$0xff] %v923
                  %v925 = vld [vmem:[%s921 + $0x8] sm:$0xff]
                  %926 = vst [vmem:[%s922 + $0x8] sm:$0xff] %v925
                  %v927 = vld [vmem:[%s921 + $0x10] sm:$0xff]
                  %928 = vst [vmem:[%s922 + $0x10] sm:$0xff] %v927
                  %v929 = vld [vmem:[%s921 + $0x18] sm:$0xff]
                  %930 = vst [vmem:[%s922 + $0x18] sm:$0xff] %v929
                  %v931 = vld [vmem:[%s921 + $0x20] sm:$0xff]
                  %932 = vst [vmem:[%s922 + $0x20] sm:$0xff] %v931
                  %v933 = vld [vmem:[%s921 + $0x28] sm:$0xff]
                  %934 = vst [vmem:[%s922 + $0x28] sm:$0xff] %v933
                  %v935 = vld [vmem:[%s921 + $0x30] sm:$0xff]
                  %936 = vst [vmem:[%s922 + $0x30] sm:$0xff] %v935
                  %v937 = vld [vmem:[%s921 + $0x38] sm:$0xff]
                  %938 = vst [vmem:[%s922 + $0x38] sm:$0xff] %v937
                  %v939 = vld [vmem:[%s921 + $0x40] sm:$0xff]
                  %940 = vst [vmem:[%s922 + $0x40] sm:$0xff] %v939
                  %v941 = vld [vmem:[%s921 + $0x48] sm:$0xff]
                  %942 = vst [vmem:[%s922 + $0x48] sm:$0xff] %v941
                  %v943 = vld [vmem:[%s921 + $0x50] sm:$0xff]
                  %944 = vst [vmem:[%s922 + $0x50] sm:$0xff] %v943
                  %v945 = vld [vmem:[%s921 + $0x58] sm:$0xff]
                  %946 = vst [vmem:[%s922 + $0x58] sm:$0xff] %v945
                  %v947 = vld [vmem:[%s921 + $0x60] sm:$0xff]
                  %948 = vst [vmem:[%s922 + $0x60] sm:$0xff] %v947
                  %v949 = vld [vmem:[%s921 + $0x68] sm:$0xff]
                  %950 = vst [vmem:[%s922 + $0x68] sm:$0xff] %v949
                  %v951 = vld [vmem:[%s921 + $0x70] sm:$0xff]
                  %952 = vst [vmem:[%s922 + $0x70] sm:$0xff] %v951
                  %v953 = vld [vmem:[%s921 + $0x78] sm:$0xff]
                  %954 = vst [vmem:[%s922 + $0x78] sm:$0xff] %v953
                  %s955 = sadd.s32 1, %s920
                  %p956 = scmp.ge.s32.totalorder %s955, %s913
                  %s957 = scalar_select %p956, 0, %s955
                  %s958 = smul.u32 %s957, 128
                  %s959 = smul.u32 %s957, 128
                  %s960 = scalar_lea.vmem %s817, %s958 [#allocation3]
                  %s961 = scalar_lea.vmem %s828, %s959
                $region75: #{tpu_custom_call.1} parent=69 // loop_footer
                  %s917 = sadd.s32 %s915, 1
                $region76: #{tpu_custom_call.1} parent=69 // loop_footer_branch
                  %914 = sbr.rel target = $region72
                $region77: #{tpu_custom_call.1} parent=69 // loop_exit
                  _
                %s962 = sshrl.u32 %s824, 4
                %s963 = sand.u32 %s824, 15
                %s964 = smul.u32 %s962, 16
                %s965 = smul.u32 8, %s964
                %s966 = scalar_lea.vmem %s817, %s965 [#allocation3]
                %s967 = smul.u32 8, %s964
                %s968 = scalar_lea.vmem %s828, %s967
                // While loop
                $region78: #{tpu_custom_call.1} parent=69 // loop_pre_header
                  _
                $region79: #{tpu_custom_call.1} parent=69 // loop_header
                  %s970 = sphi 0, %s972
                  %p971 = scmp.ge.s32.totalorder %s970, %s963
                  %s975 = sphi 0, %s982
                  %s976 = sphi %s966, %s985
                  %s977 = sphi %s968, %s986
                $region80: #{tpu_custom_call.1} parent=69 // loop_header_branch
                  %974 = sbr.rel (%p971) target = $region84
                $region81: #{tpu_custom_call.1} parent=69 // loop_body
                  %v978 = vld [vmem:[%s976] sm:$0xff]
                  %979 = vst [vmem:[%s977] sm:$0xff] %v978
                  %s980 = sadd.s32 1, %s975
                  %p981 = scmp.ge.s32.totalorder %s980, %s963
                  %s982 = scalar_select %p981, 0, %s980
                  %s983 = smul.u32 %s982, 8
                  %s984 = smul.u32 %s982, 8
                  %s985 = scalar_lea.vmem %s966, %s983 [#allocation3]
                  %s986 = scalar_lea.vmem %s968, %s984
                $region82: #{tpu_custom_call.1} parent=69 // loop_footer
                  %s972 = sadd.s32 %s970, 1
                $region83: #{tpu_custom_call.1} parent=69 // loop_footer_branch
                  %969 = sbr.rel target = $region79
                $region84: #{tpu_custom_call.1} parent=69 // loop_exit
                  _
              $region70: #{tpu_custom_call.1} parent=47 // pred_fallthru
                _
              // Predicated region
              $region85: #{tpu_custom_call.1} parent=47 // pred_check
                _
              $region86: #{tpu_custom_call.1} parent=47 // pred_check_branch
                %988 = sbr.rel target = $region88
              $region87: #{tpu_custom_call.1} parent=47 // pred_region
                _
              $region88: #{tpu_custom_call.1} parent=47 // pred_fallthru
                _
            $region48: #{tpu_custom_call.1} parent=43 // pred_fallthru
              _
            // Predicated region
            $region49: #{tpu_custom_call.1} parent=43 // pred_check
              _
            $region50: #{tpu_custom_call.1} parent=43 // pred_check_branch
              %835 = sbr.rel target = $region52
            $region51: #{tpu_custom_call.1} parent=43 // pred_region
              %s837 = sshrl.u32 %s824, 4
              // While loop
              $region53: #{tpu_custom_call.1} parent=51 // loop_pre_header
                _
              $region54: #{tpu_custom_call.1} parent=51 // loop_header
                %s839 = sphi 0, %s841
                %p840 = scmp.ge.s32.totalorder %s839, %s837
                %s844 = sphi 0, %s881
                %s845 = sphi %s817, %s884
                %s846 = sphi %s828, %s885
              $region55: #{tpu_custom_call.1} parent=51 // loop_header_branch
                %843 = sbr.rel (%p840) target = $region59
              $region56: #{tpu_custom_call.1} parent=51 // loop_body
                %v847 = vld [vmem:[%s845] sm:$0xff]
                %848 = vst [vmem:[%s846] sm:$0xff] %v847
                %v849 = vld [vmem:[%s845 + $0x8] sm:$0xff]
                %850 = vst [vmem:[%s846 + $0x8] sm:$0xff] %v849
                %v851 = vld [vmem:[%s845 + $0x10] sm:$0xff]
                %852 = vst [vmem:[%s846 + $0x10] sm:$0xff] %v851
                %v853 = vld [vmem:[%s845 + $0x18] sm:$0xff]
                %854 = vst [vmem:[%s846 + $0x18] sm:$0xff] %v853
                %v855 = vld [vmem:[%s845 + $0x20] sm:$0xff]
                %856 = vst [vmem:[%s846 + $0x20] sm:$0xff] %v855
                %v857 = vld [vmem:[%s845 + $0x28] sm:$0xff]
                %858 = vst [vmem:[%s846 + $0x28] sm:$0xff] %v857
                %v859 = vld [vmem:[%s845 + $0x30] sm:$0xff]
                %860 = vst [vmem:[%s846 + $0x30] sm:$0xff] %v859
                %v861 = vld [vmem:[%s845 + $0x38] sm:$0xff]
                %862 = vst [vmem:[%s846 + $0x38] sm:$0xff] %v861
                %v863 = vld [vmem:[%s845 + $0x40] sm:$0xff]
                %864 = vst [vmem:[%s846 + $0x40] sm:$0xff] %v863
                %v865 = vld [vmem:[%s845 + $0x48] sm:$0xff]
                %866 = vst [vmem:[%s846 + $0x48] sm:$0xff] %v865
                %v867 = vld [vmem:[%s845 + $0x50] sm:$0xff]
                %868 = vst [vmem:[%s846 + $0x50] sm:$0xff] %v867
                %v869 = vld [vmem:[%s845 + $0x58] sm:$0xff]
                %870 = vst [vmem:[%s846 + $0x58] sm:$0xff] %v869
                %v871 = vld [vmem:[%s845 + $0x60] sm:$0xff]
                %872 = vst [vmem:[%s846 + $0x60] sm:$0xff] %v871
                %v873 = vld [vmem:[%s845 + $0x68] sm:$0xff]
                %874 = vst [vmem:[%s846 + $0x68] sm:$0xff] %v873
                %v875 = vld [vmem:[%s845 + $0x70] sm:$0xff]
                %876 = vst [vmem:[%s846 + $0x70] sm:$0xff] %v875
                %v877 = vld [vmem:[%s845 + $0x78] sm:$0xff]
                %878 = vst [vmem:[%s846 + $0x78] sm:$0xff] %v877
                %s879 = sadd.s32 1, %s844
                %p880 = scmp.ge.s32.totalorder %s879, %s837
                %s881 = scalar_select %p880, 0, %s879
                %s882 = smul.u32 %s881, 128
                %s883 = smul.u32 %s881, 128
                %s884 = scalar_lea.vmem %s817, %s882 [#allocation3]
                %s885 = scalar_lea.vmem %s828, %s883
              $region57: #{tpu_custom_call.1} parent=51 // loop_footer
                %s841 = sadd.s32 %s839, 1
              $region58: #{tpu_custom_call.1} parent=51 // loop_footer_branch
                %838 = sbr.rel target = $region54
              $region59: #{tpu_custom_call.1} parent=51 // loop_exit
                _
              %s886 = sshrl.u32 %s824, 4
              %s887 = sand.u32 %s824, 15
              %s888 = smul.u32 %s886, 16
              %s889 = smul.u32 8, %s888
              %s890 = scalar_lea.vmem %s817, %s889 [#allocation3]
              %s891 = smul.u32 8, %s888
              %s892 = scalar_lea.vmem %s828, %s891
              // While loop
              $region60: #{tpu_custom_call.1} parent=51 // loop_pre_header
                _
              $region61: #{tpu_custom_call.1} parent=51 // loop_header
                %s894 = sphi 0, %s896
                %p895 = scmp.ge.s32.totalorder %s894, %s887
                %s899 = sphi 0, %s906
                %s900 = sphi %s890, %s909
                %s901 = sphi %s892, %s910
              $region62: #{tpu_custom_call.1} parent=51 // loop_header_branch
                %898 = sbr.rel (%p895) target = $region66
              $region63: #{tpu_custom_call.1} parent=51 // loop_body
                %v902 = vld [vmem:[%s900] sm:$0xff]
                %903 = vst [vmem:[%s901] sm:$0xff] %v902
                %s904 = sadd.s32 1, %s899
                %p905 = scmp.ge.s32.totalorder %s904, %s887
                %s906 = scalar_select %p905, 0, %s904
                %s907 = smul.u32 %s906, 8
                %s908 = smul.u32 %s906, 8
                %s909 = scalar_lea.vmem %s890, %s907 [#allocation3]
                %s910 = scalar_lea.vmem %s892, %s908
              $region64: #{tpu_custom_call.1} parent=51 // loop_footer
                %s896 = sadd.s32 %s894, 1
              $region65: #{tpu_custom_call.1} parent=51 // loop_footer_branch
                %893 = sbr.rel target = $region61
              $region66: #{tpu_custom_call.1} parent=51 // loop_exit
                _
            $region52: #{tpu_custom_call.1} parent=43 // pred_fallthru
              _
          $region44: #{tpu_custom_call.1} parent=39 // pred_fallthru
            _
          %989 = vnop
        $region40: #{tpu_custom_call.1} parent=35 // pred_fallthru
          _
      $region36: #{tpu_custom_call.1} parent=5 // pred_fallthru
        _
      %p990 = scmp.le.s32.totalorder 2, %s11
      // Predicated region
      $region89: #{tpu_custom_call.1} parent=5 // pred_check
        %p991 = pneg %p990
      $region90: #{tpu_custom_call.1} parent=5 // pred_check_branch
        %993 = sbr.rel (%p991) target = $region92
      $region91: #{tpu_custom_call.1} parent=5 // pred_region
        %s994 = ssub.s32 %s11, 2
        // Predicated region
        $region93: #{tpu_custom_call.1} parent=91 // pred_check
          %p995 = pneg %p129
        $region94: #{tpu_custom_call.1} parent=91 // pred_check_branch
          %997 = sbr.rel (%p995) target = $region96
        $region95: #{tpu_custom_call.1} parent=91 // pred_region
          %s998 = sand.u32 %s114, 1
          %s999 = sand.u32 %s114, 1
          %s1000 = smul.addr %s999, 128
          %s1001 = scalar_lea.vmem [#allocation3], %s1000
        $region96: #{tpu_custom_call.1} parent=91 // pred_fallthru
          _
      $region92: #{tpu_custom_call.1} parent=5 // pred_fallthru
        _
    $region6: #{tpu_custom_call.1} parent=1 // loop_footer
      %s15 = sadd.s32 1, %s11
    $region7: #{tpu_custom_call.1} parent=1 // loop_footer_branch
      %10 = sbr.rel target = $region3
    $region8: #{tpu_custom_call.1} parent=1 // loop_exit
      _

</llo_original>
